<compile_context>
chip_gen: v7x
topology: tpu7x:2x2x1
jax: 0.10.0
libtpu: 0.0.40
codegen_flags: <defaults>
</compile_context>

<pallas_src>
import functools

import jax
import jax.numpy as jnp
from jax.experimental import pallas as pl
from jax.experimental.pallas import tpu as pltpu


def _block_diag(n, patch, dtype=jnp.float32):
    """(n, n) 0/1 matrix with ones in patch x patch diagonal blocks."""
    idx = jnp.arange(n) // patch
    return (idx[:, None] == idx[None, :]).astype(dtype)


def _lexp_kernel(x_ref, ah_ref, aw_ref, o_ref, acc_ref, *, scale, mean_val):
    # x_ref  : (1, TC, TH, w)  one batch element, one channel tile, one row tile
    # ah_ref : (TH, TH)        0/1 block-diagonal row-patch membership
    # aw_ref : (w,  w)         0/1 block-diagonal col-patch membership
    # o_ref  : (1, 1, TH, w)
    # acc_ref: (TH, w) f32     channel-sum accumulator (persists over the k axis)
    k = pl.program_id(2)

    @pl.when(k == 0)
    def _():
        acc_ref[...] = jnp.zeros_like(acc_ref)

    # Partial channel sum for this channel tile (VPU adds).
    acc_ref[...] += jnp.sum(x_ref[0].astype(jnp.float32), axis=0)

    @pl.when(k == pl.num_programs(2) - 1)
    def _():
        xs = acc_ref[...]                                                   # (TH, w)
        # Pool + broadcast along W, then along H: two dense, lane-dense MXU matmuls.
        t = jnp.dot(xs, aw_ref[...], preferred_element_type=jnp.float32)    # (TH, w)
        m_up = jnp.dot(ah_ref[...], t, preferred_element_type=jnp.float32)  # (TH, w)
        # 1/(c*ps*ps) scale and squared error on the VPU.
        d = (m_up * scale - mean_val) ** 2
        o_ref[0, 0] = d.astype(o_ref.dtype)


def _vmem_limit_and_budget():
    """Generation-aware scoped-VMEM request and tile-selection budget."""
    try:
        cap = int(pltpu.get_tpu_info().vmem_capacity_bytes)
    except Exception:
        cap = 64 << 20  # conservative fallback (v7x physical VMEM)
    # ~75% of physical VMEM, capped: 96 MiB on v5e/v6e (128 MiB), 48 MiB on v7x (64 MiB).
    limit = min((cap * 3) // 4, 96 << 20)
    # Leave ~1/3 headroom inside the scoped limit for compiler scratch,
    # semaphores and layout padding, so the tile picker never outruns the compiler.
    budget = (limit * 2) // 3
    return limit, budget


def _working_set_bytes(tc, th, w):
    x_blk = 2 * tc * th * w * 4            # double-buffered input tile (dominant term)
    o_blk = 2 * th * w * 4                 # double-buffered output tile
    acc = th * w * 4                       # f32 accumulator scratch
    consts = 2 * (th * th + w * w) * 4     # double-buffered A_h / A_w constants
    temps = 4 * th * w * 4                 # xs / t / m_up / d style temporaries
    return x_blk + o_blk + acc + consts + temps


def _choose_tiles(b, c, h, w, ps, budget):
    """Pick (TH, TC): TH a multiple of ps dividing h, TC a divisor of c.

    Prefers the largest TH that (a) keeps b*(h//TH) >= 4 grid steps so the
    pipeliner has DMA/compute overlap and v7x megacore has >= 2 parallel
    points, and (b) fits the double-buffered working set in `budget`.  For
    large channel counts it shrinks TC (adding channel-reduction steps)
    before it ever shrinks TH toward patch_size.
    """
    ths = [t for t in range(ps, h + 1, ps)
           if h % t == 0 and (t % 8 == 0 or t == h)]
    ths.sort(reverse=True)
    min_steps = 4
    pipelined = [t for t in ths if b * (h // t) >= min_steps]
    if pipelined:
        ths = pipelined
    tcs = sorted((d for d in range(1, c + 1) if c % d == 0), reverse=True)
    for th in ths:
        for tc in tcs:
            if _working_set_bytes(tc, th, w) <= budget:
                return th, tc
    # Last resort for pathological shapes; may still exceed the budget.
    return ths[-1] if ths else ps, 1


def l_exp(x, patch_size=16, mean_val=0.6):
    """x: (b, c, h, w) float32 NCHW. Returns (b, 1, h, w) float32."""
    b, c, h, w = x.shape
    if h % patch_size or w % patch_size:
        raise ValueError("h and w must be multiples of patch_size "
                         "(PyTorch AvgPool2d would floor; not supported here).")

    ps = patch_size
    vmem_limit, budget = _vmem_limit_and_budget()
    th, tc = _choose_tiles(b, c, h, w, ps, budget)

    # Tiny 0/1 block-diagonal membership constants (constant index_map ->
    # fetched once, never re-DMA'd).  Kept f32 so results match the f32
    # reference bit-for-bit-ish; bf16 would be exact for A but would force a
    # lossy cast on the accumulated channel sums.
    a_h = _block_diag(th, ps)   # (TH, TH)
    a_w = _block_diag(w, ps)    # (w,  w)

    scale = 1.0 / (c * ps * ps)
    kernel = functools.partial(_lexp_kernel, scale=float(scale),
                               mean_val=float(mean_val))

    return pl.pallas_call(
        kernel,
        out_shape=jax.ShapeDtypeStruct((b, 1, h, w), jnp.float32),
        grid_spec=pltpu.PrefetchScalarGridSpec(
            num_scalar_prefetch=0,
            grid=(b, h // th, c // tc),
            in_specs=[
                pl.BlockSpec((1, tc, th, w), lambda i, j, k: (i, k, j, 0)),
                pl.BlockSpec((th, th), lambda i, j, k: (0, 0)),
                pl.BlockSpec((w, w), lambda i, j, k: (0, 0)),
            ],
            out_specs=pl.BlockSpec((1, 1, th, w), lambda i, j, k: (i, 0, j, 0)),
            scratch_shapes=[pltpu.VMEM((th, w), jnp.float32)],
        ),
        compiler_params=pltpu.CompilerParams(
            dimension_semantics=("parallel", "parallel", "arbitrary"),
            vmem_limit_bytes=vmem_limit,
        ),
    )(x, a_h, a_w)


def _l_exp_ref(x, patch_size=16, mean_val=0.6):
    """Pure-JAX reference mirroring the PyTorch forward."""
    b, c, h, w = x.shape
    xm = jnp.mean(x, axis=1, keepdims=True)                          # (b,1,h,w)
    pooled = xm.reshape(b, 1, h // patch_size, patch_size,
                        w // patch_size, patch_size).mean(axis=(3, 5))
    up = jnp.repeat(jnp.repeat(pooled, patch_size, axis=2),
                    patch_size, axis=3)                              # nearest upsample
    return (up - mean_val) ** 2


if __name__ == "__main__":
    key = jax.random.PRNGKey(0)
    # w = 128 keeps output stores lane-dense; patch_size=16 divides h and w.
    b, c, h, w = 2, 4, 128, 128
    patch_size, mean_val = 16, 0.6

    x = jax.random.uniform(key, (b, c, h, w), dtype=jnp.float32)

    out = l_exp(x, patch_size=patch_size, mean_val=mean_val)
    out = jax.block_until_ready(out)

    ref = _l_exp_ref(x, patch_size=patch_size, mean_val=mean_val)
    assert out.shape == (b, 1, h, w)
    assert jnp.allclose(out, ref, atol=1e-5, rtol=1e-5)

    print("KERNEL_OK")
</pallas_src>

<mosaic_0001>
module attributes {stable_mosaic.version = 11 : i64} {
  func.func @_lexp_kernel(%arg0: i32, %arg1: i32, %arg2: i32, %arg3: memref<1x4x64x128xf32, #tpu.memory_space<vmem>>, %arg4: memref<64x64xf32, #tpu.memory_space<vmem>>, %arg5: memref<128x128xf32, #tpu.memory_space<vmem>>, %arg6: memref<1x1x64x128xf32, #tpu.memory_space<vmem>>, %arg7: memref<64x128xf32, #tpu.memory_space<vmem>>) attributes {dimension_semantics = [#tpu.dimension_semantics<parallel>, #tpu.dimension_semantics<parallel>, #tpu.dimension_semantics<arbitrary>], iteration_bounds = array<i64: 2, 2, 1>, scalar_prefetch = 0 : i64, scratch_operands = 1 : i64, tpu.core_type = #tpu.core_type<tc>, window_params = [{transform_indices = @transform_0, window_bounds = array<i64: 1, 4, 64, 128>}, {pipeline_mode = #tpu.pipeline_mode<synchronous>, transform_indices = @transform_1, window_bounds = array<i64: 64, 64>}, {pipeline_mode = #tpu.pipeline_mode<synchronous>, transform_indices = @transform_2, window_bounds = array<i64: 128, 128>}, {transform_indices = @transform_3, window_bounds = array<i64: 1, 1, 64, 128>}]} {
    %c0_i32 = arith.constant 0 : i32
    %0 = arith.cmpi eq, %arg2, %c0_i32 : i32
    %1 = arith.extui %0 : i1 to i32
    %c0_i32_0 = arith.constant 0 : i32
    %2 = arith.cmpi ne, %1, %c0_i32_0 : i32
    scf.if %2 {
      %cst_10 = arith.constant 0.000000e+00 : f32
      %12 = vector.broadcast %cst_10 : f32 to vector<64x128xf32>
      %c0_11 = arith.constant 0 : index
      %c0_12 = arith.constant 0 : index
      %13 = vector.load %arg7[%c0_11, %c0_12] : memref<64x128xf32, #tpu.memory_space<vmem>>, vector<64x128xf32>
      tpu.vector_store %arg7[%c0_11, %c0_12], %12 {strides = array<i32>} : memref<64x128xf32, #tpu.memory_space<vmem>>, vector<64x128xf32>,
    } else {
    }
    %c0 = arith.constant 0 : index
    %c0_1 = arith.constant 0 : index
    %3 = vector.load %arg7[%c0, %c0_1] : memref<64x128xf32, #tpu.memory_space<vmem>>, vector<64x128xf32>
    %c0_2 = arith.constant 0 : index
    %c0_3 = arith.constant 0 : index
    %c0_4 = arith.constant 0 : index
    %c0_5 = arith.constant 0 : index
    %4 = vector.load %arg3[%c0_2, %c0_3, %c0_4, %c0_5] : memref<1x4x64x128xf32, #tpu.memory_space<vmem>>, vector<1x4x64x128xf32>
    %5 = vector.shape_cast %4 : vector<1x4x64x128xf32> to vector<4x64x128xf32>
    %cst = arith.constant dense<0.000000e+00> : vector<64x128xf32>
    %6 = vector.multi_reduction <add>, %5, %cst [0] : vector<4x64x128xf32> to vector<64x128xf32>
    %7 = arith.addf %3, %6 : vector<64x128xf32>
    %c0_6 = arith.constant 0 : index
    %c0_7 = arith.constant 0 : index
    %8 = vector.load %arg7[%c0_6, %c0_7] : memref<64x128xf32, #tpu.memory_space<vmem>>, vector<64x128xf32>
    tpu.vector_store %arg7[%c0_6, %c0_7], %7 {strides = array<i32>} : memref<64x128xf32, #tpu.memory_space<vmem>>, vector<64x128xf32>,
    %c0_i32_8 = arith.constant 0 : i32
    %9 = arith.cmpi eq, %arg2, %c0_i32_8 : i32
    %10 = arith.extui %9 : i1 to i32
    %c0_i32_9 = arith.constant 0 : i32
    %11 = arith.cmpi ne, %10, %c0_i32_9 : i32
    scf.if %11 {
      %c0_10 = arith.constant 0 : index
      %c0_11 = arith.constant 0 : index
      %12 = vector.load %arg7[%c0_10, %c0_11] : memref<64x128xf32, #tpu.memory_space<vmem>>, vector<64x128xf32>
      %c0_12 = arith.constant 0 : index
      %c0_13 = arith.constant 0 : index
      %13 = vector.load %arg5[%c0_12, %c0_13] : memref<128x128xf32, #tpu.memory_space<vmem>>, vector<128x128xf32>
      %cst_14 = arith.constant dense<0.000000e+00> : vector<64x128xf32>
      %14 = tpu.matmul %12, %13, %cst_14 {dimension_numbers = #tpu.dot_dimension_numbers<[1], [0], [0], [1], [0, 0, 1, 1], [], []>} : vector<64x128xf32>, vector<128x128xf32>, vector<64x128xf32> -> vector<64x128xf32>
      %c0_15 = arith.constant 0 : index
      %c0_16 = arith.constant 0 : index
      %15 = vector.load %arg4[%c0_15, %c0_16] : memref<64x64xf32, #tpu.memory_space<vmem>>, vector<64x64xf32>
      %cst_17 = arith.constant dense<0.000000e+00> : vector<64x128xf32>
      %16 = tpu.matmul %15, %14, %cst_17 {dimension_numbers = #tpu.dot_dimension_numbers<[1], [0], [0], [1], [0, 0, 1, 1], [], []>} : vector<64x64xf32>, vector<64x128xf32>, vector<64x128xf32> -> vector<64x128xf32>
      %cst_18 = arith.constant 9.765625E-4 : f32
      %17 = vector.broadcast %cst_18 : f32 to vector<64x128xf32>
      %18 = arith.mulf %16, %17 : vector<64x128xf32>
      %cst_19 = arith.constant 6.000000e-01 : f32
      %19 = vector.broadcast %cst_19 : f32 to vector<64x128xf32>
      %20 = arith.subf %18, %19 : vector<64x128xf32>
      %21 = arith.mulf %20, %20 : vector<64x128xf32>
      %c0_20 = arith.constant 0 : index
      %c0_21 = arith.constant 0 : index
      %c0_22 = arith.constant 0 : index
      %c0_23 = arith.constant 0 : index
      %22 = vector.load %arg6[%c0_20, %c0_21, %c0_22, %c0_23] : memref<1x1x64x128xf32, #tpu.memory_space<vmem>>, vector<1x1x64x128xf32>
      %23 = vector.shape_cast %22 : vector<1x1x64x128xf32> to vector<64x128xf32>
      %24 = vector.shape_cast %21 : vector<64x128xf32> to vector<1x1x64x128xf32>
      tpu.vector_store %arg6[%c0_20, %c0_21, %c0_22, %c0_23], %24 {strides = array<i32>} : memref<1x1x64x128xf32, #tpu.memory_space<vmem>>, vector<1x1x64x128xf32>,
    } else {
    }
    return
  }
  func.func @transform_0(%arg0: i32, %arg1: i32, %arg2: i32) -> (i32, i32, i32, i32) {
    %c0_i32 = arith.constant 0 : i32
    %c0_i32_0 = arith.constant 0 : i32
    return %arg0, %arg2, %arg1, %c0_i32 : i32, i32, i32, i32
  }
  func.func @transform_1(%arg0: i32, %arg1: i32, %arg2: i32) -> (i32, i32) {
    %c0_i32 = arith.constant 0 : i32
    %c0_i32_0 = arith.constant 0 : i32
    %c0_i32_1 = arith.constant 0 : i32
    return %c0_i32, %c0_i32_0 : i32, i32
  }
  func.func @transform_2(%arg0: i32, %arg1: i32, %arg2: i32) -> (i32, i32) {
    %c0_i32 = arith.constant 0 : i32
    %c0_i32_0 = arith.constant 0 : i32
    %c0_i32_1 = arith.constant 0 : i32
    return %c0_i32, %c0_i32_0 : i32, i32
  }
  func.func @transform_3(%arg0: i32, %arg1: i32, %arg2: i32) -> (i32, i32, i32, i32) {
    %c0_i32 = arith.constant 0 : i32
    %c0_i32_0 = arith.constant 0 : i32
    %c0_i32_1 = arith.constant 0 : i32
    return %arg0, %c0_i32, %arg1, %c0_i32_0 : i32, i32, i32, i32
  }
}

</mosaic_0001>

<llo_original>
// kernel: tpu_custom_call.1
$region0: #{tpu_custom_call.1}
  #allocation0 [shape = 'u32[]', space=smem, size = 0x4, offset = 0x4, fixed_abs, tag = 'smem constant byte address 0x4 - core index']
  #allocation1 [shape = 'u32[144,128]{1,0:T(1,128)}', space=vmem, size = 0x12000, scoped, tag = 'internal scratch']
  #allocation2 [shape = 'f32[64,128]{1,0:T(8,128)}', space=vmem, size = 0x8000, scoped, tag = 'scratch operand']
  #allocation10 [shape = 's32[]', space=sflag, size = 0x4, offset = 0, fixed_abs, tag = 'sflag constant byte address 0x0 - dummy sync flag']
  %s0 = inlined_call_operand.hbm [shape: f32[2,4,128,128], index: 0, kind: input, shape index: {}]
  %s1 = inlined_call_operand.hbm [shape: f32[64,64], index: 1, kind: input, shape index: {}]
  %s2 = inlined_call_operand.hbm [shape: f32[128,128], index: 2, kind: input, shape index: {}]
  %s3 = inlined_call_operand.hbm [shape: f32[2,1,128,128], index: 3, kind: output, shape index: {}]
  %s4 = sld [smem:[#allocation0]]
  $region65: #{tpu_custom_call.1} parent=0
    _
  %s6 = ssub.s32 1, %s4
  %s7 = scalar_select 0, %s6, %s4
  $region1: #{tpu_custom_call.1} parent=0
    #allocation3 [shape = 'u8[262144]{0}', space=vmem, size = 0x40000, scoped, tag = 'input window, operand 0']
    #allocation4 [shape = 's32[2]{0}', space=sflag, size = 0x8, scoped, tag = 'scoped memory for tpu_custom_call.1']
    #allocation5 [shape = 's32[2]{0}', space=sflag, size = 0x8, scoped, tag = 'scoped memory for tpu_custom_call.1']
    #allocation6 [shape = 'u8[32768]{0}', space=vmem, size = 0x8000, scoped, tag = 'input window, operand 1, single buffered']
    #allocation7 [shape = 's32[1]{0}', space=sflag, size = 0x4, scoped, tag = 'scoped memory for tpu_custom_call.1']
    #allocation8 [shape = 'u8[65536]{0}', space=vmem, size = 0x10000, scoped, tag = 'input window, operand 2, single buffered']
    #allocation9 [shape = 'u8[65536]{0}', space=vmem, size = 0x10000, scoped, tag = 'output window, operand 0']
    %8 = vsyncpa [#allocation4], 0
    %s9 = scalar_lea.sflag [#allocation4], 1
    %10 = vsyncpa %s9, 0
    %11 = vsyncpa [#allocation7], 0
    %12 = vsyncpa [#allocation5], 0
    %s13 = scalar_lea.sflag [#allocation5], 1
    %14 = vsyncpa %s13, 0
    loop: start=0, step=1, limit=6
    $region2: #{tpu_custom_call.1} parent=1 // loop_pre_header
      _
    $region3: #{tpu_custom_call.1} parent=1 // loop_header
      %s16 = sphi 0, %s20
      %p17 = scmp.ge.s32.totalorder %s16, 6
      %s23 = sphi 0, %s42
      %s24 = sphi 0, %s38
      %s25 = sphi 0, %s34
      %s26 = sphi 0, %s23
      %s27 = sphi 0, %s24
      %s28 = sphi 0, %s25
      %s29 = sphi 0, %s26
      %s30 = sphi 0, %s27
      %s31 = sphi 0, %s28
      %s49 = sphi 0, %s51
      %s52 = sphi 0, %s49
      %s53 = sphi 0, %s52
      %s69 = sphi 0, %s53
      %s73 = sphi 0, %s73
      %s75 = sphi 0, %s73
      %s76 = sphi 0, %s75
      %s90 = sphi 0, %s76
      %s94 = sphi 0, %s94
      %s96 = sphi 0, %s94
      %s97 = sphi 0, %s96
      %s111 = sphi 0, %s97
      %s119 = sphi 0, %s121
      %s122 = sphi 0, %s119
      %s123 = sphi 0, %s122
      %s139 = sphi 0, %s123
    $region4: #{tpu_custom_call.1} parent=1 // loop_header_branch
      %19 = sbr.rel (%p17) target = $region8
    $region5: #{tpu_custom_call.1} parent=1 // loop_body
      %s21 = ssub.s32 %s16, 1
      %s22 = ssub.s32 %s16, 2
      %s32 = sadd.s32 1, %s25
      %p33 = scmp.ge.s32.totalorder %s32, 1
      %s34 = scalar_select %p33, 0, %s32
      %s35 = sadd.s32 1, %s24
      %s36 = scalar_select %p33, %s35, %s24
      %p37 = scmp.ge.s32.totalorder %s36, 2
      %s38 = scalar_select %p37, 0, %s36
      %s39 = sadd.s32 1, %s23
      %s40 = scalar_select %p37, %s39, %s23
      %p41 = scmp.ge.s32.totalorder %s40, 2
      %s42 = scalar_select %p41, 0, %s40
      %s43 = ssub.s32 %s23, %s42
      %s44 = ssub.s32 %s25, %s34
      %s45 = sor.u32 %s43, %s44
      %s46 = ssub.s32 %s24, %s38
      %s47 = sor.u32 %s45, %s46
      %p48 = scmp.eq.s32.totalorder %s47, 0
      %s50 = sadd.s32 %s49, 1
      %s51 = scalar_select %p48, %s49, %s50
      %p54 = pneg %p48
      %p55 = scmp.eq.s32.totalorder %s16, 3
      %p56 = por %p54, %p55
      %p57 = scmp.ne.s32.totalorder %s49, %s52
      %p58 = scmp.eq.s32.totalorder %s16, 0
      %p59 = por %p57, %p58
      %p60 = scmp.ne.s32.totalorder %s49, %s52
      %p61 = scmp.eq.s32.totalorder %s21, 3
      %p62 = por %p60, %p61
      %p63 = scmp.ne.s32.totalorder %s52, %s53
      %p64 = scmp.eq.s32.totalorder %s21, 0
      %p65 = por %p63, %p64
      %p66 = scmp.ne.s32.totalorder %s52, %s53
      %p67 = scmp.eq.s32.totalorder %s22, 3
      %p68 = por %p66, %p67
      %p70 = scmp.ne.s32.totalorder %s53, %s69
      %p71 = scmp.eq.s32.totalorder %s22, 0
      %p72 = por %p70, %p71
      %s74 = sadd.s32 %s73, 1
      %p77 = scmp.eq.s32.totalorder %s16, 3
      %p78 = scmp.ne.s32.totalorder %s73, %s75
      %p79 = scmp.eq.s32.totalorder %s16, 0
      %p80 = por %p78, %p79
      %p81 = scmp.ne.s32.totalorder %s73, %s75
      %p82 = scmp.eq.s32.totalorder %s21, 3
      %p83 = por %p81, %p82
      %p84 = scmp.ne.s32.totalorder %s75, %s76
      %p85 = scmp.eq.s32.totalorder %s21, 0
      %p86 = por %p84, %p85
      %p87 = scmp.ne.s32.totalorder %s75, %s76
      %p88 = scmp.eq.s32.totalorder %s22, 3
      %p89 = por %p87, %p88
      %p91 = scmp.ne.s32.totalorder %s76, %s90
      %p92 = scmp.eq.s32.totalorder %s22, 0
      %p93 = por %p91, %p92
      %s95 = sadd.s32 %s94, 1
      %p98 = scmp.eq.s32.totalorder %s16, 3
      %p99 = scmp.ne.s32.totalorder %s94, %s96
      %p100 = scmp.eq.s32.totalorder %s16, 0
      %p101 = por %p99, %p100
      %p102 = scmp.ne.s32.totalorder %s94, %s96
      %p103 = scmp.eq.s32.totalorder %s21, 3
      %p104 = por %p102, %p103
      %p105 = scmp.ne.s32.totalorder %s96, %s97
      %p106 = scmp.eq.s32.totalorder %s21, 0
      %p107 = por %p105, %p106
      %p108 = scmp.ne.s32.totalorder %s96, %s97
      %p109 = scmp.eq.s32.totalorder %s22, 3
      %p110 = por %p108, %p109
      %p112 = scmp.ne.s32.totalorder %s97, %s111
      %p113 = scmp.eq.s32.totalorder %s22, 0
      %p114 = por %p112, %p113
      %s115 = ssub.s32 %s23, %s42
      %s116 = ssub.s32 %s24, %s38
      %s117 = sor.u32 %s115, %s116
      %p118 = scmp.eq.s32.totalorder %s117, 0
      %s120 = sadd.s32 %s119, 1
      %s121 = scalar_select %p118, %s119, %s120
      %p124 = pneg %p118
      %p125 = scmp.eq.s32.totalorder %s16, 3
      %p126 = por %p124, %p125
      %p127 = scmp.ne.s32.totalorder %s119, %s122
      %p128 = scmp.eq.s32.totalorder %s16, 0
      %p129 = por %p127, %p128
      %p130 = scmp.ne.s32.totalorder %s119, %s122
      %p131 = scmp.eq.s32.totalorder %s21, 3
      %p132 = por %p130, %p131
      %p133 = scmp.ne.s32.totalorder %s122, %s123
      %p134 = scmp.eq.s32.totalorder %s21, 0
      %p135 = por %p133, %p134
      %p136 = scmp.ne.s32.totalorder %s122, %s123
      %p137 = scmp.eq.s32.totalorder %s22, 3
      %p138 = por %p136, %p137
      %p140 = scmp.ne.s32.totalorder %s123, %s139
      %p141 = scmp.eq.s32.totalorder %s22, 0
      %p142 = por %p140, %p141
      %p143 = scmp.le.s32.totalorder 1, %s16
      %p144 = scmp.lt.s32.totalorder %s16, 5
      %p145 = pnand %p143, %p144
      %p146 = pneg %p145
      // Predicated region
      $region9: #{tpu_custom_call.1} parent=5 // pred_check
        _
      $region10: #{tpu_custom_call.1} parent=5 // pred_check_branch
        %148 = sbr.rel (%p145) target = $region12
      $region11: #{tpu_custom_call.1} parent=5 // pred_region
        %s149 = ssub.s32 %s16, 1
        // Predicated region
        $region13: #{tpu_custom_call.1} parent=11 // pred_check
          %p150 = pneg %p86
        $region14: #{tpu_custom_call.1} parent=11 // pred_check_branch
          %152 = sbr.rel (%p150) target = $region16
        $region15: #{tpu_custom_call.1} parent=11 // pred_region
          %s154 = ssub.s32 1024, 1024
          %155 = vsyncadd [#allocation7], %s154
          %s156 = sshll.u32 [#allocation6], 4
          %s157 = int_to_ptr.vmem [resolvable:$true] %s156
          %162 = dma.hbm_to_vmem [thread:$0]  %s1, 1024, %s157, [#allocation7], 128, 128, 8
        $region16: #{tpu_custom_call.1} parent=11 // pred_fallthru
          _
        // Predicated region
        $region17: #{tpu_custom_call.1} parent=11 // pred_check
          %p163 = pneg %p107
        $region18: #{tpu_custom_call.1} parent=11 // pred_check_branch
          %165 = sbr.rel (%p163) target = $region20
        $region19: #{tpu_custom_call.1} parent=11 // pred_region
          %s167 = ssub.s32 2048, 2048
          %168 = vsyncadd [#allocation7], %s167
          %s169 = sshll.u32 [#allocation8], 4
          %s170 = int_to_ptr.vmem [resolvable:$true] %s169
          %175 = dma.hbm_to_vmem [thread:$0]  %s2, 2048, %s170, [#allocation7], 128, 128, 8
        $region20: #{tpu_custom_call.1} parent=11 // pred_fallthru
          _
      $region12: #{tpu_custom_call.1} parent=5 // pred_fallthru
        _
      %p176 = scmp.lt.s32.totalorder %s16, 4
      // Predicated region
      $region21: #{tpu_custom_call.1} parent=5 // pred_check
        %p177 = pneg %p176
      $region22: #{tpu_custom_call.1} parent=5 // pred_check_branch
        %179 = sbr.rel (%p177) target = $region24
      $region23: #{tpu_custom_call.1} parent=5 // pred_region
        // Predicated region
        $region25: #{tpu_custom_call.1} parent=23 // pred_check
          %p180 = pneg %p59
        $region26: #{tpu_custom_call.1} parent=23 // pred_check_branch
          %182 = sbr.rel (%p180) target = $region28
        $region27: #{tpu_custom_call.1} parent=23 // pred_region
          #allocation11 [shape = 'u32[6]{0}', space=smem, size = 0x18, scoped, tag = 'DMA stride descriptor']
          %s183 = sand.u32 %s49, 1
          %s184 = scalar_lea.sflag [#allocation4], %s183
          %s185 = sand.u32 %s49, 1
          %s186 = smul.addr %s185, 256
          %s187 = scalar_lea.vmem [#allocation3], %s186
          %s188 = smul.u32 4, %s25
          %s189 = smul.u32 8, %s24
          %s191 = ssub.s32 4096, 4096
          %192 = vsyncadd %s184, %s191
          %s193 = smul.addr %s188, 16
          %s194 = sadd.s32 %s189, %s193
          %s195 = smul.addr %s23, 64
          %s196 = sadd.s32 %s194, %s195
          %s197 = smul.addr %s196, 128
          %s198 = scalar_lea.hbm %s0, %s197
          %s200 = sshll.u32 1, 14
          %s201 = sxor.u32 4294967295, %s200
          %s203 = sld [smem:[#allocation0]]
          %s204 = sadd.s32 2, %s203
          %s206 = sshll.u32 7, 26
          %s207 = sxor.u32 4294967295, %s206
          %s208 = sand.u32 0, %s207
          %s209 = sshll.u32 %s204, 26
          %s210 = sor.u32 %s208, %s209
          %s211 = sshll.u32 %s187, 4
          %s212 = int_to_ptr.vmem [resolvable:$true] %s211
          %218 = sst [smem:[#allocation11]] 2048
          %s219 = scalar_lea.smem [#allocation11], 1
          %220 = sst [smem:[%s219]] 1024
          %s221 = scalar_lea.smem [#allocation11], 2
          %222 = sst [smem:[%s221]] 8
          %s223 = scalar_lea.smem [#allocation11], 3
          %224 = sst [smem:[%s223]] 128
          %s225 = scalar_lea.smem [#allocation11], 4
          %226 = sst [smem:[%s225]] 128
          %s227 = scalar_lea.smem [#allocation11], 5
          %228 = sst [smem:[%s227]] 8
          %230 = dma.general %s198, 4096, %s212, %s184, [#allocation10], [#allocation11], %s210, 0
        $region28: #{tpu_custom_call.1} parent=23 // pred_fallthru
          _
      $region24: #{tpu_custom_call.1} parent=5 // pred_fallthru
        _
      %p231 = scmp.le.s32.totalorder 1, %s16
      %p232 = scmp.lt.s32.totalorder %s16, 5
      %p233 = pnand %p231, %p232
      %p234 = pneg %p233
      // Predicated region
      $region29: #{tpu_custom_call.1} parent=5 // pred_check
        _
      $region30: #{tpu_custom_call.1} parent=5 // pred_check_branch
        %236 = sbr.rel (%p233) target = $region32
      $region31: #{tpu_custom_call.1} parent=5 // pred_region
        %s237 = ssub.s32 %s16, 1
        %s238 = sand.u32 %s52, 1
        %s239 = scalar_lea.sflag [#allocation4], %s238
        %s240 = sand.u32 %s52, 1
        %s241 = smul.addr %s240, 256
        %s242 = scalar_lea.vmem [#allocation3], %s241
        // Predicated region
        $region33: #{tpu_custom_call.1} parent=31 // pred_check
          %p243 = pneg %p65
        $region34: #{tpu_custom_call.1} parent=31 // pred_check_branch
          %245 = sbr.rel (%p243) target = $region36
        $region35: #{tpu_custom_call.1} parent=31 // pred_region
          %246 = dma.done %s239, 4096
        $region36: #{tpu_custom_call.1} parent=31 // pred_fallthru
          _
        // Predicated region
        $region37: #{tpu_custom_call.1} parent=31 // pred_check
          %p247 = pneg %p86
        $region38: #{tpu_custom_call.1} parent=31 // pred_check_branch
          %249 = sbr.rel (%p247) target = $region40
        $region39: #{tpu_custom_call.1} parent=31 // pred_region
          %250 = dma.done [#allocation7], 1024
        $region40: #{tpu_custom_call.1} parent=31 // pred_fallthru
          _
        // Predicated region
        $region41: #{tpu_custom_call.1} parent=31 // pred_check
          %p251 = pneg %p107
        $region42: #{tpu_custom_call.1} parent=31 // pred_check_branch
          %253 = sbr.rel (%p251) target = $region44
        $region43: #{tpu_custom_call.1} parent=31 // pred_region
          %254 = dma.done [#allocation7], 2048
        $region44: #{tpu_custom_call.1} parent=31 // pred_fallthru
          _
        %s255 = sand.u32 %s52, 1
        %s256 = scalar_lea.sflag [#allocation4], %s255
        %s257 = sand.u32 %s52, 1
        %s258 = smul.addr %s257, 256
        %s259 = scalar_lea.vmem [#allocation3], %s258
        %p260 = pneg %p65
        %p261 = pneg %p62
        %p262 = pneg %p86
        %p263 = pneg %p83
        %p264 = pneg %p107
        %p265 = pneg %p104
        %p266 = pneg %p135
        %p267 = pneg %p132
        %s268 = sand.u32 %s122, 1
        %s269 = scalar_lea.sflag [#allocation5], %s268
        %s270 = sand.u32 %s122, 1
        %s271 = smul.addr %s270, 64
        %s272 = scalar_lea.vmem [#allocation9], %s271
        %s273 = smul.u32 4, %s28
        %s274 = smul.u32 8, %s27
        %s275 = smul.u32 8, %s27
        %p276 = scmp.eq.s32.totalorder %s28, 0
        // Predicated region
        $region45: #{tpu_custom_call.1} parent=31 // pred_check
          %p277 = pneg %p276
        $region46: #{tpu_custom_call.1} parent=31 // pred_check_branch
          %279 = sbr.rel (%p277) target = $region48
        $region47: #{tpu_custom_call.1} parent=31 // pred_region
          %280 = vst [vmem:[#allocation2] sm:$0xff] 0.0
          %281 = vst [vmem:[#allocation2 + $0x8] sm:$0xff] 0.0
          %282 = vst [vmem:[#allocation2 + $0x10] sm:$0xff] 0.0
          %283 = vst [vmem:[#allocation2 + $0x18] sm:$0xff] 0.0
          %284 = vst [vmem:[#allocation2 + $0x20] sm:$0xff] 0.0
          %285 = vst [vmem:[#allocation2 + $0x28] sm:$0xff] 0.0
          %286 = vst [vmem:[#allocation2 + $0x30] sm:$0xff] 0.0
          %287 = vst [vmem:[#allocation2 + $0x38] sm:$0xff] 0.0
        $region48: #{tpu_custom_call.1} parent=31 // pred_fallthru
          _
        %v288 = vld [vmem:[#allocation2] sm:$0xff]
        %v289 = vld [vmem:[#allocation2 + $0x8] sm:$0xff]
        %v290 = vld [vmem:[#allocation2 + $0x10] sm:$0xff]
        %v291 = vld [vmem:[#allocation2 + $0x18] sm:$0xff]
        %v292 = vld [vmem:[#allocation2 + $0x20] sm:$0xff]
        %v293 = vld [vmem:[#allocation2 + $0x28] sm:$0xff]
        %v294 = vld [vmem:[#allocation2 + $0x30] sm:$0xff]
        %v295 = vld [vmem:[#allocation2 + $0x38] sm:$0xff]
        %v296 = vld [vmem:[%s242] sm:$0xff]
        %v297 = vld [vmem:[%s242 + $0x8] sm:$0xff]
        %v298 = vld [vmem:[%s242 + $0x10] sm:$0xff]
        %v299 = vld [vmem:[%s242 + $0x18] sm:$0xff]
        %v300 = vld [vmem:[%s242 + $0x20] sm:$0xff]
        %v301 = vld [vmem:[%s242 + $0x28] sm:$0xff]
        %v302 = vld [vmem:[%s242 + $0x30] sm:$0xff]
        %v303 = vld [vmem:[%s242 + $0x38] sm:$0xff]
        %v304 = vld [vmem:[%s242 + $0x40] sm:$0xff]
        %v305 = vld [vmem:[%s242 + $0x48] sm:$0xff]
        %v306 = vld [vmem:[%s242 + $0x50] sm:$0xff]
        %v307 = vld [vmem:[%s242 + $0x58] sm:$0xff]
        %v308 = vld [vmem:[%s242 + $0x60] sm:$0xff]
        %v309 = vld [vmem:[%s242 + $0x68] sm:$0xff]
        %v310 = vld [vmem:[%s242 + $0x70] sm:$0xff]
        %v311 = vld [vmem:[%s242 + $0x78] sm:$0xff]
        %v312 = vld [vmem:[%s242 + $0x80] sm:$0xff]
        %v313 = vld [vmem:[%s242 + $0x88] sm:$0xff]
        %v314 = vld [vmem:[%s242 + $0x90] sm:$0xff]
        %v315 = vld [vmem:[%s242 + $0x98] sm:$0xff]
        %v316 = vld [vmem:[%s242 + $0xa0] sm:$0xff]
        %v317 = vld [vmem:[%s242 + $0xa8] sm:$0xff]
        %v318 = vld [vmem:[%s242 + $0xb0] sm:$0xff]
        %v319 = vld [vmem:[%s242 + $0xb8] sm:$0xff]
        %v320 = vld [vmem:[%s242 + $0xc0] sm:$0xff]
        %v321 = vld [vmem:[%s242 + $0xc8] sm:$0xff]
        %v322 = vld [vmem:[%s242 + $0xd0] sm:$0xff]
        %v323 = vld [vmem:[%s242 + $0xd8] sm:$0xff]
        %v324 = vld [vmem:[%s242 + $0xe0] sm:$0xff]
        %v325 = vld [vmem:[%s242 + $0xe8] sm:$0xff]
        %v326 = vld [vmem:[%s242 + $0xf0] sm:$0xff]
        %v327 = vld [vmem:[%s242 + $0xf8] sm:$0xff]
        %v328 = vadd.f32 %v296, %v304
        %v329 = vadd.f32 %v328, %v312
        %v330 = vadd.f32 %v329, %v320
        %v331 = vadd.f32 %v297, %v305
        %v332 = vadd.f32 %v331, %v313
        %v333 = vadd.f32 %v332, %v321
        %v334 = vadd.f32 %v298, %v306
        %v335 = vadd.f32 %v334, %v314
        %v336 = vadd.f32 %v335, %v322
        %v337 = vadd.f32 %v299, %v307
        %v338 = vadd.f32 %v337, %v315
        %v339 = vadd.f32 %v338, %v323
        %v340 = vadd.f32 %v300, %v308
        %v341 = vadd.f32 %v340, %v316
        %v342 = vadd.f32 %v341, %v324
        %v343 = vadd.f32 %v301, %v309
        %v344 = vadd.f32 %v343, %v317
        %v345 = vadd.f32 %v344, %v325
        %v346 = vadd.f32 %v302, %v310
        %v347 = vadd.f32 %v346, %v318
        %v348 = vadd.f32 %v347, %v326
        %v349 = vadd.f32 %v303, %v311
        %v350 = vadd.f32 %v349, %v319
        %v351 = vadd.f32 %v350, %v327
        %v352 = vadd.f32 %v288, %v330
        %v353 = vadd.f32 %v289, %v333
        %v354 = vadd.f32 %v290, %v336
        %v355 = vadd.f32 %v291, %v339
        %v356 = vadd.f32 %v292, %v342
        %v357 = vadd.f32 %v293, %v345
        %v358 = vadd.f32 %v294, %v348
        %v359 = vadd.f32 %v295, %v351
        %360 = vst [vmem:[#allocation2] sm:$0xff] %v352
        %361 = vst [vmem:[#allocation2 + $0x8] sm:$0xff] %v353
        %362 = vst [vmem:[#allocation2 + $0x10] sm:$0xff] %v354
        %363 = vst [vmem:[#allocation2 + $0x18] sm:$0xff] %v355
        %364 = vst [vmem:[#allocation2 + $0x20] sm:$0xff] %v356
        %365 = vst [vmem:[#allocation2 + $0x28] sm:$0xff] %v357
        %366 = vst [vmem:[#allocation2 + $0x30] sm:$0xff] %v358
        %367 = vst [vmem:[#allocation2 + $0x38] sm:$0xff] %v359
        // Predicated region
        $region49: #{tpu_custom_call.1} parent=31 // pred_check
          %p368 = pneg %p276
        $region50: #{tpu_custom_call.1} parent=31 // pred_check_branch
          %370 = sbr.rel (%p368) target = $region52
        $region51: #{tpu_custom_call.1} parent=31 // pred_region
          %v371 = vld [vmem:[#allocation2] sm:$0xff]
          %v372 = vld [vmem:[#allocation2 + $0x8] sm:$0xff]
          %v373 = vld [vmem:[#allocation2 + $0x10] sm:$0xff]
          %v374 = vld [vmem:[#allocation2 + $0x18] sm:$0xff]
          %v375 = vld [vmem:[#allocation2 + $0x20] sm:$0xff]
          %v376 = vld [vmem:[#allocation2 + $0x28] sm:$0xff]
          %v377 = vld [vmem:[#allocation2 + $0x30] sm:$0xff]
          %v378 = vld [vmem:[#allocation2 + $0x38] sm:$0xff]
          %v379 = vld [vmem:[#allocation8] sm:$0xff]
          %v380 = vld [vmem:[#allocation8 + $0x8] sm:$0xff]
          %v381 = vld [vmem:[#allocation8 + $0x10] sm:$0xff]
          %v382 = vld [vmem:[#allocation8 + $0x18] sm:$0xff]
          %v383 = vld [vmem:[#allocation8 + $0x20] sm:$0xff]
          %v384 = vld [vmem:[#allocation8 + $0x28] sm:$0xff]
          %v385 = vld [vmem:[#allocation8 + $0x30] sm:$0xff]
          %v386 = vld [vmem:[#allocation8 + $0x38] sm:$0xff]
          %v387 = vld [vmem:[#allocation8 + $0x40] sm:$0xff]
          %v388 = vld [vmem:[#allocation8 + $0x48] sm:$0xff]
          %v389 = vld [vmem:[#allocation8 + $0x50] sm:$0xff]
          %v390 = vld [vmem:[#allocation8 + $0x58] sm:$0xff]
          %v391 = vld [vmem:[#allocation8 + $0x60] sm:$0xff]
          %v392 = vld [vmem:[#allocation8 + $0x68] sm:$0xff]
          %v393 = vld [vmem:[#allocation8 + $0x70] sm:$0xff]
          %v394 = vld [vmem:[#allocation8 + $0x78] sm:$0xff]
          %395 = vmatprep.subr.mxu0 0.0
          %396 = vmatpush1.msra.mxu0 %v379
          %397 = vmatprep.subr.mxu0 0.0
          %398 = vmatpush1.msra.mxu0 %v380
          %399 = vmatprep.subr.mxu0 0.0
          %400 = vmatpush1.msra.mxu0 %v381
          %401 = vmatprep.subr.mxu0 0.0
          %402 = vmatpush1.msra.mxu0 %v382
          %403 = vmatprep.subr.mxu0 0.0
          %404 = vmatpush1.msra.mxu0 %v383
          %405 = vmatprep.subr.mxu0 0.0
          %406 = vmatpush1.msra.mxu0 %v384
          %407 = vmatprep.subr.mxu0 0.0
          %408 = vmatpush1.msra.mxu0 %v385
          %409 = vmatprep.subr.mxu0 0.0
          %410 = vmatpush1.msra.mxu0 %v386
          %411 = vmatprep.subr.mxu0 0.0
          %412 = vmatpush1.msra.mxu0 %v387
          %413 = vmatprep.subr.mxu0 0.0
          %414 = vmatpush1.msra.mxu0 %v388
          %415 = vmatprep.subr.mxu0 0.0
          %416 = vmatpush1.msra.mxu0 %v389
          %417 = vmatprep.subr.mxu0 0.0
          %418 = vmatpush1.msra.mxu0 %v390
          %419 = vmatprep.subr.mxu0 0.0
          %420 = vmatpush1.msra.mxu0 %v391
          %421 = vmatprep.subr.mxu0 0.0
          %422 = vmatpush1.msra.mxu0 %v392
          %423 = vmatprep.subr.mxu0 0.0
          %424 = vmatpush1.msra.mxu0 %v393
          %425 = vmatprep.subr.mxu0 0.0
          %426 = vmatpush1.msra.mxu0 %v394
          %427 = vmatprep.subr.mxu0 0.0
          %428 = vmatpush1.msra.mxu0 0.0
          %429 = vmatprep.subr.mxu0 0.0
          %430 = vmatpush1.msra.mxu0 0.0
          %431 = vmatprep.subr.mxu0 0.0
          %432 = vmatpush1.msra.mxu0 0.0
          %433 = vmatprep.subr.mxu0 0.0
          %434 = vmatpush1.msra.mxu0 0.0
          %435 = vmatprep.subr.mxu0 0.0
          %436 = vmatpush1.msra.mxu0 0.0
          %437 = vmatprep.subr.mxu0 0.0
          %438 = vmatpush1.msra.mxu0 0.0
          %439 = vmatprep.subr.mxu0 0.0
          %440 = vmatpush1.msra.mxu0 0.0
          %441 = vmatprep.subr.mxu0 0.0
          %442 = vmatpush1.msra.mxu0 0.0
          %443 = vmatprep.subr.mxu0 0.0
          %444 = vmatpush1.msra.mxu0 0.0
          %445 = vmatprep.subr.mxu0 0.0
          %446 = vmatpush1.msra.mxu0 0.0
          %447 = vmatprep.subr.mxu0 0.0
          %448 = vmatpush1.msra.mxu0 0.0
          %449 = vmatprep.subr.mxu0 0.0
          %450 = vmatpush1.msra.mxu0 0.0
          %451 = vmatprep.subr.mxu0 0.0
          %452 = vmatpush1.msra.mxu0 0.0
          %453 = vmatprep.subr.mxu0 0.0
          %454 = vmatpush1.msra.mxu0 0.0
          %455 = vmatprep.subr.mxu0 0.0
          %456 = vmatpush1.msra.mxu0 0.0
          %457 = vmatprep.subr.mxu0 0.0
          %458 = vmatpush1.msra.mxu0 0.0
          %459 = vmatprep.mubr.f32.mxu0 0.0
          %460 = vmatmul.mubr.f32.gmra.mrb[0].mxu0 %v371
          %v461 = vpop.f32.mrb[0].mxu0
          %v462 = vadd.f32 0.0, %v461
          %v463 = vpop.f32.mrb[0].mxu0
          %464 = vmatprep.mubr.f32.mxu0 0.0
          %465 = vmatmul.mubr.f32.gmra.mrb[0].mxu0 %v372
          %v466 = vpop.f32.mrb[0].mxu0
          %v467 = vadd.f32 0.0, %v466
          %v468 = vpop.f32.mrb[0].mxu0
          %469 = vmatprep.mubr.f32.mxu0 0.0
          %470 = vmatmul.mubr.f32.gmra.mrb[0].mxu0 %v373
          %v471 = vpop.f32.mrb[0].mxu0
          %v472 = vadd.f32 0.0, %v471
          %v473 = vpop.f32.mrb[0].mxu0
          %474 = vmatprep.mubr.f32.mxu0 0.0
          %475 = vmatmul.mubr.f32.gmra.mrb[0].mxu0 %v374
          %v476 = vpop.f32.mrb[0].mxu0
          %v477 = vadd.f32 0.0, %v476
          %v478 = vpop.f32.mrb[0].mxu0
          %479 = vmatprep.mubr.f32.mxu0 0.0
          %480 = vmatmul.mubr.f32.gmra.mrb[0].mxu0 %v375
          %v481 = vpop.f32.mrb[0].mxu0
          %v482 = vadd.f32 0.0, %v481
          %v483 = vpop.f32.mrb[0].mxu0
          %484 = vmatprep.mubr.f32.mxu0 0.0
          %485 = vmatmul.mubr.f32.gmra.mrb[0].mxu0 %v376
          %v486 = vpop.f32.mrb[0].mxu0
          %v487 = vadd.f32 0.0, %v486
          %v488 = vpop.f32.mrb[0].mxu0
          %489 = vmatprep.mubr.f32.mxu0 0.0
          %490 = vmatmul.mubr.f32.gmra.mrb[0].mxu0 %v377
          %v491 = vpop.f32.mrb[0].mxu0
          %v492 = vadd.f32 0.0, %v491
          %v493 = vpop.f32.mrb[0].mxu0
          %494 = vmatprep.mubr.f32.mxu0 0.0
          %495 = vmatmul.mubr.f32.gmra.mrb[0].mxu0 %v378
          %v496 = vpop.f32.mrb[0].mxu0
          %v497 = vadd.f32 0.0, %v496
          %v498 = vpop.f32.mrb[0].mxu0
          %499 = vdwg.mxu0
          %v500 = vld [vmem:[#allocation6] sm:$0xff]
          %v501 = vld [vmem:[#allocation6 + $0x8] sm:$0xff]
          %v502 = vld [vmem:[#allocation6 + $0x10] sm:$0xff]
          %v503 = vld [vmem:[#allocation6 + $0x18] sm:$0xff]
          %v504 = vld [vmem:[#allocation6 + $0x20] sm:$0xff]
          %v505 = vld [vmem:[#allocation6 + $0x28] sm:$0xff]
          %v506 = vld [vmem:[#allocation6 + $0x30] sm:$0xff]
          %v507 = vld [vmem:[#allocation6 + $0x38] sm:$0xff]
          %vm508 = vcmask 523264
          %v510 = vsel %vm508, %v500, 0
          %v513 = vsel %vm508, %v501, 0
          %v516 = vsel %vm508, %v502, 0
          %v519 = vsel %vm508, %v503, 0
          %v522 = vsel %vm508, %v504, 0
          %v525 = vsel %vm508, %v505, 0
          %v528 = vsel %vm508, %v506, 0
          %v531 = vsel %vm508, %v507, 0
          %533 = vmatprep.subr.mxu0 0.0
          %534 = vmatpush1.msra.mxu0 %v462
          %535 = vmatprep.subr.mxu0 0.0
          %536 = vmatpush1.msra.mxu0 %v467
          %537 = vmatprep.subr.mxu0 0.0
          %538 = vmatpush1.msra.mxu0 %v472
          %539 = vmatprep.subr.mxu0 0.0
          %540 = vmatpush1.msra.mxu0 %v477
          %541 = vmatprep.subr.mxu0 0.0
          %542 = vmatpush1.msra.mxu0 %v482
          %543 = vmatprep.subr.mxu0 0.0
          %544 = vmatpush1.msra.mxu0 %v487
          %545 = vmatprep.subr.mxu0 0.0
          %546 = vmatpush1.msra.mxu0 %v492
          %547 = vmatprep.subr.mxu0 0.0
          %548 = vmatpush1.msra.mxu0 %v497
          %549 = vmatprep.subr.mxu0 0.0
          %550 = vmatpush1.msra.mxu0 0.0
          %551 = vmatprep.subr.mxu0 0.0
          %552 = vmatpush1.msra.mxu0 0.0
          %553 = vmatprep.subr.mxu0 0.0
          %554 = vmatpush1.msra.mxu0 0.0
          %555 = vmatprep.subr.mxu0 0.0
          %556 = vmatpush1.msra.mxu0 0.0
          %557 = vmatprep.subr.mxu0 0.0
          %558 = vmatpush1.msra.mxu0 0.0
          %559 = vmatprep.subr.mxu0 0.0
          %560 = vmatpush1.msra.mxu0 0.0
          %561 = vmatprep.subr.mxu0 0.0
          %562 = vmatpush1.msra.mxu0 0.0
          %563 = vmatprep.subr.mxu0 0.0
          %564 = vmatpush1.msra.mxu0 0.0
          %565 = vmatprep.subr.mxu0 0.0
          %566 = vmatpush1.msra.mxu0 0.0
          %567 = vmatprep.subr.mxu0 0.0
          %568 = vmatpush1.msra.mxu0 0.0
          %569 = vmatprep.subr.mxu0 0.0
          %570 = vmatpush1.msra.mxu0 0.0
          %571 = vmatprep.subr.mxu0 0.0
          %572 = vmatpush1.msra.mxu0 0.0
          %573 = vmatprep.subr.mxu0 0.0
          %574 = vmatpush1.msra.mxu0 0.0
          %575 = vmatprep.subr.mxu0 0.0
          %576 = vmatpush1.msra.mxu0 0.0
          %577 = vmatprep.subr.mxu0 0.0
          %578 = vmatpush1.msra.mxu0 0.0
          %579 = vmatprep.subr.mxu0 0.0
          %580 = vmatpush1.msra.mxu0 0.0
          %581 = vmatprep.subr.mxu0 0.0
          %582 = vmatpush1.msra.mxu0 0.0
          %583 = vmatprep.subr.mxu0 0.0
          %584 = vmatpush1.msra.mxu0 0.0
          %585 = vmatprep.subr.mxu0 0.0
          %586 = vmatpush1.msra.mxu0 0.0
          %587 = vmatprep.subr.mxu0 0.0
          %588 = vmatpush1.msra.mxu0 0.0
          %589 = vmatprep.subr.mxu0 0.0
          %590 = vmatpush1.msra.mxu0 0.0
          %591 = vmatprep.subr.mxu0 0.0
          %592 = vmatpush1.msra.mxu0 0.0
          %593 = vmatprep.subr.mxu0 0.0
          %594 = vmatpush1.msra.mxu0 0.0
          %595 = vmatprep.subr.mxu0 0.0
          %596 = vmatpush1.msra.mxu0 0.0
          %597 = vmatprep.mubr.f32.mxu0 0.0
          %598 = vmatmul.mubr.f32.gmra.mrb[0].mxu0 %v510
          %v599 = vpop.f32.mrb[0].mxu0
          %v600 = vadd.f32 0.0, %v599
          %v601 = vpop.f32.mrb[0].mxu0
          %602 = vmatprep.mubr.f32.mxu0 0.0
          %603 = vmatmul.mubr.f32.gmra.mrb[0].mxu0 %v513
          %v604 = vpop.f32.mrb[0].mxu0
          %v605 = vadd.f32 0.0, %v604
          %v606 = vpop.f32.mrb[0].mxu0
          %607 = vmatprep.mubr.f32.mxu0 0.0
          %608 = vmatmul.mubr.f32.gmra.mrb[0].mxu0 %v516
          %v609 = vpop.f32.mrb[0].mxu0
          %v610 = vadd.f32 0.0, %v609
          %v611 = vpop.f32.mrb[0].mxu0
          %612 = vmatprep.mubr.f32.mxu0 0.0
          %613 = vmatmul.mubr.f32.gmra.mrb[0].mxu0 %v519
          %v614 = vpop.f32.mrb[0].mxu0
          %v615 = vadd.f32 0.0, %v614
          %v616 = vpop.f32.mrb[0].mxu0
          %617 = vmatprep.mubr.f32.mxu0 0.0
          %618 = vmatmul.mubr.f32.gmra.mrb[0].mxu0 %v522
          %v619 = vpop.f32.mrb[0].mxu0
          %v620 = vadd.f32 0.0, %v619
          %v621 = vpop.f32.mrb[0].mxu0
          %622 = vmatprep.mubr.f32.mxu0 0.0
          %623 = vmatmul.mubr.f32.gmra.mrb[0].mxu0 %v525
          %v624 = vpop.f32.mrb[0].mxu0
          %v625 = vadd.f32 0.0, %v624
          %v626 = vpop.f32.mrb[0].mxu0
          %627 = vmatprep.mubr.f32.mxu0 0.0
          %628 = vmatmul.mubr.f32.gmra.mrb[0].mxu0 %v528
          %v629 = vpop.f32.mrb[0].mxu0
          %v630 = vadd.f32 0.0, %v629
          %v631 = vpop.f32.mrb[0].mxu0
          %632 = vmatprep.mubr.f32.mxu0 0.0
          %633 = vmatmul.mubr.f32.gmra.mrb[0].mxu0 %v531
          %v634 = vpop.f32.mrb[0].mxu0
          %v635 = vadd.f32 0.0, %v634
          %v636 = vpop.f32.mrb[0].mxu0
          %637 = vdwg.mxu0
          %v638 = vmul.f32 %v600, 0.0009765625
          %v639 = vmul.f32 %v605, 0.0009765625
          %v640 = vmul.f32 %v610, 0.0009765625
          %v641 = vmul.f32 %v615, 0.0009765625
          %v642 = vmul.f32 %v620, 0.0009765625
          %v643 = vmul.f32 %v625, 0.0009765625
          %v644 = vmul.f32 %v630, 0.0009765625
          %v645 = vmul.f32 %v635, 0.0009765625
          %v646 = vsub.f32 %v638, 0.6
          %v647 = vsub.f32 %v639, 0.6
          %v648 = vsub.f32 %v640, 0.6
          %v649 = vsub.f32 %v641, 0.6
          %v650 = vsub.f32 %v642, 0.6
          %v651 = vsub.f32 %v643, 0.6
          %v652 = vsub.f32 %v644, 0.6
          %v653 = vsub.f32 %v645, 0.6
          %v654 = vmul.f32 %v646, %v646
          %v655 = vmul.f32 %v647, %v647
          %v656 = vmul.f32 %v648, %v648
          %v657 = vmul.f32 %v649, %v649
          %v658 = vmul.f32 %v650, %v650
          %v659 = vmul.f32 %v651, %v651
          %v660 = vmul.f32 %v652, %v652
          %v661 = vmul.f32 %v653, %v653
          %662 = vst [vmem:[%s272] sm:$0xff] %v654
          %663 = vst [vmem:[%s272 + $0x8] sm:$0xff] %v655
          %664 = vst [vmem:[%s272 + $0x10] sm:$0xff] %v656
          %665 = vst [vmem:[%s272 + $0x18] sm:$0xff] %v657
          %666 = vst [vmem:[%s272 + $0x20] sm:$0xff] %v658
          %667 = vst [vmem:[%s272 + $0x28] sm:$0xff] %v659
          %668 = vst [vmem:[%s272 + $0x30] sm:$0xff] %v660
          %669 = vst [vmem:[%s272 + $0x38] sm:$0xff] %v661
        $region52: #{tpu_custom_call.1} parent=31 // pred_fallthru
          _
        %s670 = sand.u32 %s122, 1
        %s671 = scalar_lea.sflag [#allocation5], %s670
        %s672 = sand.u32 %s122, 1
        %s673 = smul.addr %s672, 64
        %s674 = scalar_lea.vmem [#allocation9], %s673
        // Predicated region
        $region53: #{tpu_custom_call.1} parent=31 // pred_check
          %p675 = pneg %p132
        $region54: #{tpu_custom_call.1} parent=31 // pred_check_branch
          %677 = sbr.rel (%p675) target = $region56
        $region55: #{tpu_custom_call.1} parent=31 // pred_region
          %s678 = smul.u32 8, %s27
          %s680 = ssub.s32 1024, 1024
          %681 = vsyncadd %s671, %s680
          %s682 = smul.addr %s26, 16
          %s683 = sadd.s32 %s678, %s682
          %s684 = smul.addr %s683, 128
          %s685 = scalar_lea.hbm %s3, %s684
          %s686 = sshll.u32 %s674, 4
          %s687 = int_to_ptr.vmem [resolvable:$true] %s686
          %692 = dma.vmem_to_hbm [thread:$0]  %s687, 1024, %s685, %s671, 128, 128, 8
        $region56: #{tpu_custom_call.1} parent=31 // pred_fallthru
          _
      $region32: #{tpu_custom_call.1} parent=5 // pred_fallthru
        _
      %p693 = scmp.le.s32.totalorder 2, %s16
      // Predicated region
      $region57: #{tpu_custom_call.1} parent=5 // pred_check
        %p694 = pneg %p693
      $region58: #{tpu_custom_call.1} parent=5 // pred_check_branch
        %696 = sbr.rel (%p694) target = $region60
      $region59: #{tpu_custom_call.1} parent=5 // pred_region
        %s697 = ssub.s32 %s16, 2
        // Predicated region
        $region61: #{tpu_custom_call.1} parent=59 // pred_check
          %p698 = pneg %p138
        $region62: #{tpu_custom_call.1} parent=59 // pred_check_branch
          %700 = sbr.rel (%p698) target = $region64
        $region63: #{tpu_custom_call.1} parent=59 // pred_region
          %s701 = sand.u32 %s123, 1
          %s702 = scalar_lea.sflag [#allocation5], %s701
          %s703 = sand.u32 %s123, 1
          %s704 = smul.addr %s703, 64
          %s705 = scalar_lea.vmem [#allocation9], %s704
          %706 = dma.done %s702, 1024
        $region64: #{tpu_custom_call.1} parent=59 // pred_fallthru
          _
      $region60: #{tpu_custom_call.1} parent=5 // pred_fallthru
        _
    $region6: #{tpu_custom_call.1} parent=1 // loop_footer
      %s20 = sadd.s32 1, %s16
    $region7: #{tpu_custom_call.1} parent=1 // loop_footer_branch
      %15 = sbr.rel target = $region3
    $region8: #{tpu_custom_call.1} parent=1 // loop_exit
      _
    %707 = vsyncpa [#allocation4], 1
    %s708 = scalar_lea.sflag [#allocation4], 1
    %709 = vsyncpa %s708, 1
    %710 = vsyncpa [#allocation7], 1
    %711 = vsyncpa [#allocation5], 1
    %s712 = scalar_lea.sflag [#allocation5], 1
    %713 = vsyncpa %s712, 1

</llo_original>
